<compile_context>
chip_gen: v7x
topology: tpu7x:2x2x1
jax: 0.10.0
libtpu: 0.0.40
codegen_flags: <defaults>
</compile_context>

<pallas_src>
import functools

import jax
import jax.numpy as jnp
from jax.experimental import pallas as pl
from jax.experimental.pallas import tpu as pltpu


def _focal_kernel(alpha_ref, logits_ref, tgt_ref, sum_out_ref, cnt_out_ref,
                  sum_acc, cnt_acc, *, gamma, ignore_index, hw, tile_p):
    p = pl.program_id(1)

    @pl.when(p == 0)
    def _():
        sum_acc[...] = jnp.zeros_like(sum_acc)
        cnt_acc[...] = jnp.zeros_like(cnt_acc)

    x = logits_ref[...].astype(jnp.float32)            # (C, TP) classes on sublanes
    t = tgt_ref[...]                                   # (1, TP) int32

    # Numerically stable softmax pieces over the class (sublane) axis.
    m = jnp.max(x, axis=0, keepdims=True)              # (1, TP)
    z = x - m                                          # (C, TP)
    exp_z = jnp.exp(z)                                 # (C, TP) -- reused for p_t
    sum_exp = jnp.sum(exp_z, axis=0, keepdims=True)    # (1, TP)

    # Target selection without materializing a full f32 one-hot / logp.
    cls = jax.lax.broadcasted_iota(jnp.int32, x.shape, 0)   # (C, TP)
    sel = cls == t                                           # (C, TP) bool

    z_t = jnp.sum(jnp.where(sel, z, 0.0), axis=0, keepdims=True)          # (1, TP)
    exp_z_t = jnp.sum(jnp.where(sel, exp_z, 0.0), axis=0, keepdims=True)  # (1, TP)
    alpha = alpha_ref[...].astype(jnp.float32)                            # (C, 1)
    alpha_t = jnp.sum(jnp.where(sel, alpha, 0.0), axis=0, keepdims=True)  # (1, TP)

    logp_t = z_t - jnp.log(sum_exp)                    # (1, TP)
    p_t = exp_z_t / sum_exp                            # (1, TP), no 2nd exp

    # Validity: a real (in-bounds) pixel AND not ignore_index. The global
    # pixel index guards against garbage in the ragged last tile.
    lane = jax.lax.broadcasted_iota(jnp.int32, t.shape, 1)   # (1, TP)
    in_range = (p * tile_p + lane) < hw
    valid = jnp.logical_and(t != ignore_index, in_range)     # (1, TP) bool

    # Focal factor (1 - p_t) ** gamma: integer gamma -> VPU multiplies only.
    one_minus_p = jnp.maximum(1.0 - p_t, 0.0)
    g = float(gamma)
    if g.is_integer() and 0 <= int(g) <= 16:
        e = int(g)
        focal = jnp.ones_like(one_minus_p)
        base = one_minus_p
        while e:
            if e & 1:
                focal = focal * base
            e >>= 1
            if e:
                base = base * base
    else:
        focal = jnp.power(one_minus_p, g)

    loss = -alpha_t * focal * logp_t                   # (1, TP)

    # Lane-resident accumulation; select (not multiply) so invalid/garbage
    # columns contribute exactly zero even if they carry inf/NaN.
    sum_acc[...] += jnp.where(valid, loss, 0.0)
    cnt_acc[...] += jnp.where(valid, 1.0, 0.0)

    @pl.when(p == pl.num_programs(1) - 1)
    def _():
        # Single cross-lane reduce per batch element; partial outputs only.
        sum_out_ref[...] = jnp.sum(sum_acc[...], axis=1, keepdims=True)   # (1, 1)
        cnt_out_ref[...] = jnp.sum(cnt_acc[...], axis=1, keepdims=True)   # (1, 1)


def _vmem_budget_bytes():
    """(tile budget, vmem_limit) -- generation dependent, v7x-safe fallback."""
    cap = None
    try:
        info = pltpu.get_tpu_info()
        for name in ("vmem_capacity_bytes", "vmem_bytes", "vmem_size_bytes"):
            cap = getattr(info, name, None)
            if cap:
                break
    except Exception:
        cap = None
    if cap is not None and cap >= (100 << 20):
        # v5e / v6e: 128 MiB physical VMEM per TensorCore.
        return 64 << 20, 100 << 20
    # v7x (64 MiB per TensorCore) or unknown: conservative.
    return 24 << 20, 48 << 20


def _choose_tile_p(C, HW, itemsize, budget_bytes):
    # Bytes of VMEM per pixel column:
    #   double-buffered streaming inputs: 2 * (C*itemsize + 4)   (logits + i32 tgt)
    #   (C, TP) f32 temporaries (x, z, exp_z, where-temp) + bool mask
    #   ~14 live (1, TP) f32 vectors incl. the two accumulators
    per_px = 2 * (C * itemsize + 4) + (4 * 4 + 1) * C + 56
    tp = budget_bytes // per_px
    tp = max(128, (tp // 128) * 128)
    if HW >= 128:
        # Keep the block within the array; the last (partial) tile handles the
        # ragged remainder via the in-kernel global-pixel mask.
        tp = min(tp, (HW // 128) * 128)
    else:
        tp = HW          # block == full lane extent (allowed by the tiling rule)
    return tp


def focal_loss(logits, targets, alpha=None, gamma=2.0, ignore_index=255,
               tile_p=None):
    """logits: (B, C, H, W) float; targets: (B, H, W) int; alpha: (C,) float."""
    B, C, H, W = logits.shape
    HW = H * W

    # Pixels on lanes, classes on sublanes -- pure reshapes, no transpose, no pad.
    logits3 = logits.reshape(B, C, HW)
    targets3 = targets.reshape(B, 1, HW).astype(jnp.int32)

    if alpha is None:
        alpha = jnp.ones((C,), jnp.float32)
    alpha2d = jnp.asarray(alpha, jnp.float32).reshape(C, 1)

    budget, vmem_limit = _vmem_budget_bytes()
    if tile_p is None:
        tile_p = _choose_tile_p(C, HW, jnp.dtype(logits.dtype).itemsize, budget)

    n_pt = pl.cdiv(HW, tile_p)
    grid = (B, n_pt)

    kernel = functools.partial(_focal_kernel, gamma=float(gamma),
                               ignore_index=int(ignore_index),
                               hw=HW, tile_p=tile_p)

    part_sum, part_cnt = pl.pallas_call(
        kernel,
        out_shape=(jax.ShapeDtypeStruct((B, 1, 1), jnp.float32),
                   jax.ShapeDtypeStruct((B, 1, 1), jnp.float32)),
        grid_spec=pltpu.PrefetchScalarGridSpec(
            num_scalar_prefetch=0,
            grid=grid,
            in_specs=[
                pl.BlockSpec((C, 1), lambda b, p: (0, 0)),                 # alpha
                pl.BlockSpec((None, C, tile_p), lambda b, p: (b, 0, p)),   # logits
                pl.BlockSpec((None, 1, tile_p), lambda b, p: (b, 0, p)),   # targets
            ],
            out_specs=[
                pl.BlockSpec((None, 1, 1), lambda b, p: (b, 0, 0)),        # per-b sum
                pl.BlockSpec((None, 1, 1), lambda b, p: (b, 0, 0)),        # per-b count
            ],
            scratch_shapes=[
                pltpu.VMEM((1, tile_p), jnp.float32),   # per-lane loss sums
                pltpu.VMEM((1, tile_p), jnp.float32),   # per-lane valid counts
            ],
        ),
        compiler_params=pltpu.CompilerParams(
            # Batch axis parallel -> both v7x TensorCores; pixel axis is the
            # sequential accumulation axis. Neutral on single-TC v5e/v6e.
            dimension_semantics=("parallel", "arbitrary"),
            vmem_limit_bytes=vmem_limit),
    )(alpha2d, logits3, targets3)

    total = jnp.sum(part_sum)
    count = jnp.sum(part_cnt)
    # Matches reference mean over valid pixels (0 instead of NaN if none valid).
    return total / jnp.maximum(count, 1.0)


def focal_loss_ref(logits, targets, alpha, gamma=2.0, ignore_index=255):
    """Pure-JAX reference mirroring the PyTorch forward."""
    B, C, H, W = logits.shape
    logits_flat = jnp.transpose(logits, (0, 2, 3, 1)).reshape(-1, C)
    targets_flat = targets.reshape(-1)
    valid = targets_flat != ignore_index
    logp = jax.nn.log_softmax(logits_flat, axis=1)
    onehot = jax.nn.one_hot(jnp.where(valid, targets_flat, 0), C)
    logp_t = jnp.sum(logp * onehot, axis=1)
    p_t = jnp.exp(logp_t)
    alpha_t = jnp.sum(alpha[None, :] * onehot, axis=1)
    loss = -alpha_t * (1.0 - p_t) ** gamma * logp_t
    loss = jnp.where(valid, loss, 0.0)
    return jnp.sum(loss) / jnp.maximum(jnp.sum(valid.astype(jnp.float32)), 1.0)


if __name__ == "__main__":
    key = jax.random.PRNGKey(0)
    k1, k2, k3 = jax.random.split(key, 3)

    B, C, H, W = 2, 4, 16, 16
    gamma = 2.0
    ignore_index = 255

    logits = jax.random.normal(k1, (B, C, H, W), dtype=jnp.float32)
    targets = jax.random.randint(k2, (B, H, W), 0, C, dtype=jnp.int32)
    # sprinkle in some ignored pixels
    ign_mask = jax.random.uniform(k3, (B, H, W)) < 0.1
    targets = jnp.where(ign_mask, ignore_index, targets)

    # deterministic per-class weights (alpha: Tensor[C])
    alpha = 0.25 + 0.5 * jnp.arange(C, dtype=jnp.float32) / C

    out = focal_loss(logits, targets, alpha, gamma=gamma,
                     ignore_index=ignore_index)
    out = jax.block_until_ready(out)

    ref = focal_loss_ref(logits, targets, alpha, gamma=gamma,
                         ignore_index=ignore_index)
    assert jnp.allclose(out, ref, rtol=1e-5, atol=1e-6), (out, ref)

    print("KERNEL_OK")
</pallas_src>

<mosaic_0001>
module attributes {stable_mosaic.version = 11 : i64} {
  func.func @_focal_kernel(%arg0: i32, %arg1: i32, %arg2: memref<4x1xf32, #tpu.memory_space<vmem>>, %arg3: memref<1x4x256xf32, #tpu.memory_space<vmem>>, %arg4: memref<1x1x256xi32, #tpu.memory_space<vmem>>, %arg5: memref<1x1x1xf32, #tpu.memory_space<vmem>>, %arg6: memref<1x1x1xf32, #tpu.memory_space<vmem>>, %arg7: memref<1x256xf32, #tpu.memory_space<vmem>>, %arg8: memref<1x256xf32, #tpu.memory_space<vmem>>) attributes {dimension_semantics = [#tpu.dimension_semantics<parallel>, #tpu.dimension_semantics<arbitrary>], iteration_bounds = array<i64: 2, 1>, scalar_prefetch = 0 : i64, scratch_operands = 2 : i64, tpu.core_type = #tpu.core_type<tc>, window_params = [{pipeline_mode = #tpu.pipeline_mode<synchronous>, transform_indices = @transform_0, window_bounds = array<i64: 4, 1>}, {transform_indices = @transform_1, window_bounds = array<i64: 1, 4, 256>}, {transform_indices = @transform_2, window_bounds = array<i64: 1, 1, 256>}, {transform_indices = @transform_3, window_bounds = array<i64: 1, 1, 1>}, {transform_indices = @transform_4, window_bounds = array<i64: 1, 1, 1>}]} {
    %c0_i32 = arith.constant 0 : i32
    %0 = arith.cmpi eq, %arg1, %c0_i32 : i32
    %1 = arith.extui %0 : i1 to i32
    %c0_i32_0 = arith.constant 0 : i32
    %2 = arith.cmpi ne, %1, %c0_i32_0 : i32
    scf.if %2 {
      %cst_33 = arith.constant 0.000000e+00 : f32
      %69 = vector.broadcast %cst_33 : f32 to vector<1x256xf32>
      %c0_34 = arith.constant 0 : index
      %c0_35 = arith.constant 0 : index
      %70 = vector.load %arg7[%c0_34, %c0_35] : memref<1x256xf32, #tpu.memory_space<vmem>>, vector<1x256xf32>
      tpu.vector_store %arg7[%c0_34, %c0_35], %69 {strides = array<i32>} : memref<1x256xf32, #tpu.memory_space<vmem>>, vector<1x256xf32>,
      %cst_36 = arith.constant 0.000000e+00 : f32
      %71 = vector.broadcast %cst_36 : f32 to vector<1x256xf32>
      %c0_37 = arith.constant 0 : index
      %c0_38 = arith.constant 0 : index
      %72 = vector.load %arg8[%c0_37, %c0_38] : memref<1x256xf32, #tpu.memory_space<vmem>>, vector<1x256xf32>
      tpu.vector_store %arg8[%c0_37, %c0_38], %71 {strides = array<i32>} : memref<1x256xf32, #tpu.memory_space<vmem>>, vector<1x256xf32>,
    } else {
    }
    %c0 = arith.constant 0 : index
    %c0_1 = arith.constant 0 : index
    %c0_2 = arith.constant 0 : index
    %3 = vector.load %arg3[%c0, %c0_1, %c0_2] : memref<1x4x256xf32, #tpu.memory_space<vmem>>, vector<1x4x256xf32>
    %4 = vector.shape_cast %3 : vector<1x4x256xf32> to vector<4x256xf32>
    %c0_3 = arith.constant 0 : index
    %c0_4 = arith.constant 0 : index
    %c0_5 = arith.constant 0 : index
    %5 = vector.load %arg4[%c0_3, %c0_4, %c0_5] : memref<1x1x256xi32, #tpu.memory_space<vmem>>, vector<1x1x256xi32>
    %6 = vector.shape_cast %5 : vector<1x1x256xi32> to vector<1x256xi32>
    %cst = arith.constant dense<0xFF800000> : vector<256xf32>
    %7 = vector.multi_reduction <maximumf>, %4, %cst [0] : vector<4x256xf32> to vector<256xf32>
    %8 = vector.shape_cast %7 : vector<256xf32> to vector<1x256xf32>
    %9 = vector.broadcast %8 : vector<1x256xf32> to vector<4x256xf32>
    %10 = arith.subf %4, %9 : vector<4x256xf32>
    %11 = math.exp %10 : vector<4x256xf32>
    %cst_6 = arith.constant dense<0.000000e+00> : vector<256xf32>
    %12 = vector.multi_reduction <add>, %11, %cst_6 [0] : vector<4x256xf32> to vector<256xf32>
    %13 = vector.shape_cast %12 : vector<256xf32> to vector<1x256xf32>
    %14 = tpu.iota {dimensions = array<i32: 0>} : vector<4x256xi32>
    %15 = vector.broadcast %6 : vector<1x256xi32> to vector<4x256xi32>
    %16 = arith.cmpi eq, %14, %15 : vector<4x256xi32>
    %cst_7 = arith.constant 0.000000e+00 : f32
    %17 = vector.broadcast %cst_7 : f32 to vector<4x256xf32>
    %18 = arith.select %16, %10, %17 : vector<4x256xi1>, vector<4x256xf32>
    %cst_8 = arith.constant dense<0.000000e+00> : vector<256xf32>
    %19 = vector.multi_reduction <add>, %18, %cst_8 [0] : vector<4x256xf32> to vector<256xf32>
    %20 = vector.shape_cast %19 : vector<256xf32> to vector<1x256xf32>
    %cst_9 = arith.constant 0.000000e+00 : f32
    %21 = vector.broadcast %cst_9 : f32 to vector<4x256xf32>
    %22 = arith.select %16, %11, %21 : vector<4x256xi1>, vector<4x256xf32>
    %cst_10 = arith.constant dense<0.000000e+00> : vector<256xf32>
    %23 = vector.multi_reduction <add>, %22, %cst_10 [0] : vector<4x256xf32> to vector<256xf32>
    %24 = vector.shape_cast %23 : vector<256xf32> to vector<1x256xf32>
    %c0_11 = arith.constant 0 : index
    %c0_12 = arith.constant 0 : index
    %25 = vector.load %arg2[%c0_11, %c0_12] : memref<4x1xf32, #tpu.memory_space<vmem>>, vector<4x1xf32>
    %cst_13 = arith.constant 0.000000e+00 : f32
    %26 = vector.shape_cast %25 : vector<4x1xf32> to vector<4x1xf32>
    %27 = vector.broadcast %26 : vector<4x1xf32> to vector<4x256xf32>
    %28 = vector.broadcast %cst_13 : f32 to vector<4x256xf32>
    %29 = arith.select %16, %27, %28 : vector<4x256xi1>, vector<4x256xf32>
    %cst_14 = arith.constant dense<0.000000e+00> : vector<256xf32>
    %30 = vector.multi_reduction <add>, %29, %cst_14 [0] : vector<4x256xf32> to vector<256xf32>
    %31 = vector.shape_cast %30 : vector<256xf32> to vector<1x256xf32>
    %32 = math.log %13 : vector<1x256xf32>
    %33 = arith.subf %20, %32 : vector<1x256xf32>
    %34 = arith.divf %24, %13 : vector<1x256xf32>
    %35 = tpu.iota {dimensions = array<i32: 1>} : vector<1x256xi32>
    %c256_i32 = arith.constant 256 : i32
    %36 = arith.muli %arg1, %c256_i32 : i32
    %37 = vector.broadcast %36 : i32 to vector<1x256xi32>
    %38 = arith.addi %37, %35 : vector<1x256xi32>
    %c256_i32_15 = arith.constant 256 : i32
    %39 = vector.broadcast %c256_i32_15 : i32 to vector<1x256xi32>
    %40 = arith.cmpi slt, %38, %39 : vector<1x256xi32>
    %c255_i32 = arith.constant 255 : i32
    %41 = vector.broadcast %c255_i32 : i32 to vector<1x256xi32>
    %42 = arith.cmpi ne, %6, %41 : vector<1x256xi32>
    %43 = arith.andi %42, %40 : vector<1x256xi1>
    %cst_16 = arith.constant 1.000000e+00 : f32
    %44 = vector.broadcast %cst_16 : f32 to vector<1x256xf32>
    %45 = arith.subf %44, %34 : vector<1x256xf32>
    %cst_17 = arith.constant 0.000000e+00 : f32
    %46 = vector.broadcast %cst_17 : f32 to vector<1x256xf32>
    %47 = arith.maximumf %45, %46 : vector<1x256xf32>
    %cst_18 = arith.constant 1.000000e+00 : f32
    %48 = vector.broadcast %cst_18 : f32 to vector<1x256xf32>
    %49 = arith.mulf %47, %47 : vector<1x256xf32>
    %50 = arith.mulf %48, %49 : vector<1x256xf32>
    %cst_19 = arith.constant 0.000000e+00 : f32
    %51 = vector.broadcast %cst_19 : f32 to vector<1x256xf32>
    %52 = arith.subf %51, %31 : vector<1x256xf32>
    %53 = arith.mulf %52, %50 : vector<1x256xf32>
    %54 = arith.mulf %53, %33 : vector<1x256xf32>
    %c0_20 = arith.constant 0 : index
    %c0_21 = arith.constant 0 : index
    %55 = vector.load %arg7[%c0_20, %c0_21] : memref<1x256xf32, #tpu.memory_space<vmem>>, vector<1x256xf32>
    %cst_22 = arith.constant 0.000000e+00 : f32
    %56 = vector.broadcast %cst_22 : f32 to vector<1x256xf32>
    %57 = arith.select %43, %54, %56 : vector<1x256xi1>, vector<1x256xf32>
    %58 = arith.addf %55, %57 : vector<1x256xf32>
    %c0_23 = arith.constant 0 : index
    %c0_24 = arith.constant 0 : index
    %59 = vector.load %arg7[%c0_23, %c0_24] : memref<1x256xf32, #tpu.memory_space<vmem>>, vector<1x256xf32>
    tpu.vector_store %arg7[%c0_23, %c0_24], %58 {strides = array<i32>} : memref<1x256xf32, #tpu.memory_space<vmem>>, vector<1x256xf32>,
    %c0_25 = arith.constant 0 : index
    %c0_26 = arith.constant 0 : index
    %60 = vector.load %arg8[%c0_25, %c0_26] : memref<1x256xf32, #tpu.memory_space<vmem>>, vector<1x256xf32>
    %cst_27 = arith.constant 1.000000e+00 : f32
    %cst_28 = arith.constant 0.000000e+00 : f32
    %61 = vector.broadcast %cst_27 : f32 to vector<1x256xf32>
    %62 = vector.broadcast %cst_28 : f32 to vector<1x256xf32>
    %63 = arith.select %43, %61, %62 : vector<1x256xi1>, vector<1x256xf32>
    %64 = arith.addf %60, %63 : vector<1x256xf32>
    %c0_29 = arith.constant 0 : index
    %c0_30 = arith.constant 0 : index
    %65 = vector.load %arg8[%c0_29, %c0_30] : memref<1x256xf32, #tpu.memory_space<vmem>>, vector<1x256xf32>
    tpu.vector_store %arg8[%c0_29, %c0_30], %64 {strides = array<i32>} : memref<1x256xf32, #tpu.memory_space<vmem>>, vector<1x256xf32>,
    %c0_i32_31 = arith.constant 0 : i32
    %66 = arith.cmpi eq, %arg1, %c0_i32_31 : i32
    %67 = arith.extui %66 : i1 to i32
    %c0_i32_32 = arith.constant 0 : i32
    %68 = arith.cmpi ne, %67, %c0_i32_32 : i32
    scf.if %68 {
      %c0_33 = arith.constant 0 : index
      %c0_34 = arith.constant 0 : index
      %69 = vector.load %arg7[%c0_33, %c0_34] : memref<1x256xf32, #tpu.memory_space<vmem>>, vector<1x256xf32>
      %cst_35 = arith.constant dense<0.000000e+00> : vector<1xf32>
      %70 = vector.multi_reduction <add>, %69, %cst_35 [1] : vector<1x256xf32> to vector<1xf32>
      %71 = vector.shape_cast %70 : vector<1xf32> to vector<1x1xf32>
      %c0_36 = arith.constant 0 : index
      %c0_37 = arith.constant 0 : index
      %c0_38 = arith.constant 0 : index
      %72 = vector.load %arg5[%c0_36, %c0_37, %c0_38] : memref<1x1x1xf32, #tpu.memory_space<vmem>>, vector<1x1x1xf32>
      %73 = vector.shape_cast %72 : vector<1x1x1xf32> to vector<1x1xf32>
      %74 = vector.shape_cast %71 : vector<1x1xf32> to vector<1x1x1xf32>
      tpu.vector_store %arg5[%c0_36, %c0_37, %c0_38], %74 {strides = array<i32>} : memref<1x1x1xf32, #tpu.memory_space<vmem>>, vector<1x1x1xf32>,
      %c0_39 = arith.constant 0 : index
      %c0_40 = arith.constant 0 : index
      %75 = vector.load %arg8[%c0_39, %c0_40] : memref<1x256xf32, #tpu.memory_space<vmem>>, vector<1x256xf32>
      %cst_41 = arith.constant dense<0.000000e+00> : vector<1xf32>
      %76 = vector.multi_reduction <add>, %75, %cst_41 [1] : vector<1x256xf32> to vector<1xf32>
      %77 = vector.shape_cast %76 : vector<1xf32> to vector<1x1xf32>
      %c0_42 = arith.constant 0 : index
      %c0_43 = arith.constant 0 : index
      %c0_44 = arith.constant 0 : index
      %78 = vector.load %arg6[%c0_42, %c0_43, %c0_44] : memref<1x1x1xf32, #tpu.memory_space<vmem>>, vector<1x1x1xf32>
      %79 = vector.shape_cast %78 : vector<1x1x1xf32> to vector<1x1xf32>
      %80 = vector.shape_cast %77 : vector<1x1xf32> to vector<1x1x1xf32>
      tpu.vector_store %arg6[%c0_42, %c0_43, %c0_44], %80 {strides = array<i32>} : memref<1x1x1xf32, #tpu.memory_space<vmem>>, vector<1x1x1xf32>,
    } else {
    }
    return
  }
  func.func @transform_0(%arg0: i32, %arg1: i32) -> (i32, i32) {
    %c0_i32 = arith.constant 0 : i32
    %c0_i32_0 = arith.constant 0 : i32
    %c0_i32_1 = arith.constant 0 : i32
    return %c0_i32, %c0_i32_0 : i32, i32
  }
  func.func @transform_1(%arg0: i32, %arg1: i32) -> (i32, i32, i32) {
    %c0_i32 = arith.constant 0 : i32
    %c0_i32_0 = arith.constant 0 : i32
    return %arg0, %c0_i32, %arg1 : i32, i32, i32
  }
  func.func @transform_2(%arg0: i32, %arg1: i32) -> (i32, i32, i32) {
    %c0_i32 = arith.constant 0 : i32
    %c0_i32_0 = arith.constant 0 : i32
    return %arg0, %c0_i32, %arg1 : i32, i32, i32
  }
  func.func @transform_3(%arg0: i32, %arg1: i32) -> (i32, i32, i32) {
    %c0_i32 = arith.constant 0 : i32
    %c0_i32_0 = arith.constant 0 : i32
    %c0_i32_1 = arith.constant 0 : i32
    return %arg0, %c0_i32, %c0_i32_0 : i32, i32, i32
  }
  func.func @transform_4(%arg0: i32, %arg1: i32) -> (i32, i32, i32) {
    %c0_i32 = arith.constant 0 : i32
    %c0_i32_0 = arith.constant 0 : i32
    %c0_i32_1 = arith.constant 0 : i32
    return %arg0, %c0_i32, %c0_i32_0 : i32, i32, i32
  }
}

</mosaic_0001>

<llo_original>
// kernel: tpu_custom_call.1
$region0: #{tpu_custom_call.1}
  #allocation0 [shape = 'u32[]', space=smem, size = 0x4, offset = 0x4, fixed_abs, tag = 'smem constant byte address 0x4 - core index']
  #allocation1 [shape = 'u32[144,128]{1,0:T(1,128)}', space=vmem, size = 0x12000, scoped, tag = 'internal scratch']
  #allocation2 [shape = 'f32[1,256]{1,0:T(1,128)}', space=vmem, size = 0x400, scoped, tag = 'scratch operand']
  #allocation3 [shape = 'f32[1,256]{1,0:T(1,128)}', space=vmem, size = 0x400, scoped, tag = 'scratch operand']
  %s0 = inlined_call_operand.vmem [shape: f32[4,1], index: 0, kind: input, shape index: {}]
  %s1 = inlined_call_operand.hbm [shape: f32[2,4,256], index: 1, kind: input, shape index: {}]
  %s2 = inlined_call_operand.vmem [shape: s32[2,1,256], index: 2, kind: input, shape index: {}]
  %s3 = inlined_call_operand.vmem [shape: f32[2,1,1], index: 3, kind: output, shape index: {0}]
  %s4 = inlined_call_operand.vmem [shape: f32[2,1,1], index: 4, kind: output, shape index: {1}]
  %5 = xla_tuple %s3, %s4
  %s6 = sld [smem:[#allocation0]]
  $region65: #{tpu_custom_call.1} parent=0
    _
  %s8 = ssub.s32 1, %s6
  %s9 = scalar_select 0, %s8, %s6
  $region1: #{tpu_custom_call.1} parent=0
    #allocation4 [shape = 'u8[8192]{0}', space=vmem, size = 0x2000, scoped, tag = 'input window, operand 1']
    #allocation5 [shape = 's32[2]{0}', space=sflag, size = 0x8, scoped, tag = 'scoped memory for tpu_custom_call.1']
    %10 = vsyncpa [#allocation5], 0
    %s11 = scalar_lea.sflag [#allocation5], 1
    %12 = vsyncpa %s11, 0
    loop: start=0, step=1, limit=4
    $region2: #{tpu_custom_call.1} parent=1 // loop_pre_header
      _
    $region3: #{tpu_custom_call.1} parent=1 // loop_header
      %s14 = sphi 0, %s18
      %p15 = scmp.ge.s32.totalorder %s14, 4
      %s21 = sphi 0, %s33
      %s22 = sphi 0, %s29
      %s23 = sphi 0, %s21
      %s24 = sphi 0, %s22
      %s25 = sphi 0, %s23
      %s26 = sphi 0, %s24
      %s34 = sphi 0, %s34
      %s36 = sphi 0, %s34
      %s37 = sphi 0, %s36
      %s51 = sphi 0, %s37
      %s59 = sphi 0, %s61
      %s62 = sphi 0, %s59
      %s63 = sphi 0, %s62
      %s79 = sphi 0, %s63
      %s87 = sphi 0, %s89
      %s90 = sphi 0, %s87
      %s91 = sphi 0, %s90
      %s107 = sphi 0, %s91
      %s113 = sphi 0, %s115
      %s116 = sphi 0, %s113
      %s117 = sphi 0, %s116
      %s133 = sphi 0, %s117
      %s139 = sphi 0, %s141
      %s142 = sphi 0, %s139
      %s143 = sphi 0, %s142
      %s159 = sphi 0, %s143
    $region4: #{tpu_custom_call.1} parent=1 // loop_header_branch
      %17 = sbr.rel (%p15) target = $region8
    $region5: #{tpu_custom_call.1} parent=1 // loop_body
      %s19 = ssub.s32 %s14, 1
      %s20 = ssub.s32 %s14, 2
      %s27 = sadd.s32 1, %s22
      %p28 = scmp.ge.s32.totalorder %s27, 1
      %s29 = scalar_select %p28, 0, %s27
      %s30 = sadd.s32 1, %s21
      %s31 = scalar_select %p28, %s30, %s21
      %p32 = scmp.ge.s32.totalorder %s31, 2
      %s33 = scalar_select %p32, 0, %s31
      %s35 = sadd.s32 %s34, 1
      %p38 = scmp.eq.s32.totalorder %s14, 1
      %p39 = scmp.ne.s32.totalorder %s34, %s36
      %p40 = scmp.eq.s32.totalorder %s14, 0
      %p41 = por %p39, %p40
      %p42 = scmp.ne.s32.totalorder %s34, %s36
      %p43 = scmp.eq.s32.totalorder %s19, 1
      %p44 = por %p42, %p43
      %p45 = scmp.ne.s32.totalorder %s36, %s37
      %p46 = scmp.eq.s32.totalorder %s19, 0
      %p47 = por %p45, %p46
      %p48 = scmp.ne.s32.totalorder %s36, %s37
      %p49 = scmp.eq.s32.totalorder %s20, 1
      %p50 = por %p48, %p49
      %p52 = scmp.ne.s32.totalorder %s37, %s51
      %p53 = scmp.eq.s32.totalorder %s20, 0
      %p54 = por %p52, %p53
      %s55 = ssub.s32 %s21, %s33
      %s56 = ssub.s32 %s22, %s29
      %s57 = sor.u32 %s55, %s56
      %p58 = scmp.eq.s32.totalorder %s57, 0
      %s60 = sadd.s32 %s59, 1
      %s61 = scalar_select %p58, %s59, %s60
      %p64 = pneg %p58
      %p65 = scmp.eq.s32.totalorder %s14, 1
      %p66 = por %p64, %p65
      %p67 = scmp.ne.s32.totalorder %s59, %s62
      %p68 = scmp.eq.s32.totalorder %s14, 0
      %p69 = por %p67, %p68
      %p70 = scmp.ne.s32.totalorder %s59, %s62
      %p71 = scmp.eq.s32.totalorder %s19, 1
      %p72 = por %p70, %p71
      %p73 = scmp.ne.s32.totalorder %s62, %s63
      %p74 = scmp.eq.s32.totalorder %s19, 0
      %p75 = por %p73, %p74
      %p76 = scmp.ne.s32.totalorder %s62, %s63
      %p77 = scmp.eq.s32.totalorder %s20, 1
      %p78 = por %p76, %p77
      %p80 = scmp.ne.s32.totalorder %s63, %s79
      %p81 = scmp.eq.s32.totalorder %s20, 0
      %p82 = por %p80, %p81
      %s83 = ssub.s32 %s21, %s33
      %s84 = ssub.s32 %s22, %s29
      %s85 = sor.u32 %s83, %s84
      %p86 = scmp.eq.s32.totalorder %s85, 0
      %s88 = sadd.s32 %s87, 1
      %s89 = scalar_select %p86, %s87, %s88
      %p92 = pneg %p86
      %p93 = scmp.eq.s32.totalorder %s14, 1
      %p94 = por %p92, %p93
      %p95 = scmp.ne.s32.totalorder %s87, %s90
      %p96 = scmp.eq.s32.totalorder %s14, 0
      %p97 = por %p95, %p96
      %p98 = scmp.ne.s32.totalorder %s87, %s90
      %p99 = scmp.eq.s32.totalorder %s19, 1
      %p100 = por %p98, %p99
      %p101 = scmp.ne.s32.totalorder %s90, %s91
      %p102 = scmp.eq.s32.totalorder %s19, 0
      %p103 = por %p101, %p102
      %p104 = scmp.ne.s32.totalorder %s90, %s91
      %p105 = scmp.eq.s32.totalorder %s20, 1
      %p106 = por %p104, %p105
      %p108 = scmp.ne.s32.totalorder %s91, %s107
      %p109 = scmp.eq.s32.totalorder %s20, 0
      %p110 = por %p108, %p109
      %s111 = ssub.s32 %s21, %s33
      %p112 = scmp.eq.s32.totalorder %s111, 0
      %s114 = sadd.s32 %s113, 1
      %s115 = scalar_select %p112, %s113, %s114
      %p118 = pneg %p112
      %p119 = scmp.eq.s32.totalorder %s14, 1
      %p120 = por %p118, %p119
      %p121 = scmp.ne.s32.totalorder %s113, %s116
      %p122 = scmp.eq.s32.totalorder %s14, 0
      %p123 = por %p121, %p122
      %p124 = scmp.ne.s32.totalorder %s113, %s116
      %p125 = scmp.eq.s32.totalorder %s19, 1
      %p126 = por %p124, %p125
      %p127 = scmp.ne.s32.totalorder %s116, %s117
      %p128 = scmp.eq.s32.totalorder %s19, 0
      %p129 = por %p127, %p128
      %p130 = scmp.ne.s32.totalorder %s116, %s117
      %p131 = scmp.eq.s32.totalorder %s20, 1
      %p132 = por %p130, %p131
      %p134 = scmp.ne.s32.totalorder %s117, %s133
      %p135 = scmp.eq.s32.totalorder %s20, 0
      %p136 = por %p134, %p135
      %s137 = ssub.s32 %s21, %s33
      %p138 = scmp.eq.s32.totalorder %s137, 0
      %s140 = sadd.s32 %s139, 1
      %s141 = scalar_select %p138, %s139, %s140
      %p144 = pneg %p138
      %p145 = scmp.eq.s32.totalorder %s14, 1
      %p146 = por %p144, %p145
      %p147 = scmp.ne.s32.totalorder %s139, %s142
      %p148 = scmp.eq.s32.totalorder %s14, 0
      %p149 = por %p147, %p148
      %p150 = scmp.ne.s32.totalorder %s139, %s142
      %p151 = scmp.eq.s32.totalorder %s19, 1
      %p152 = por %p150, %p151
      %p153 = scmp.ne.s32.totalorder %s142, %s143
      %p154 = scmp.eq.s32.totalorder %s19, 0
      %p155 = por %p153, %p154
      %p156 = scmp.ne.s32.totalorder %s142, %s143
      %p157 = scmp.eq.s32.totalorder %s20, 1
      %p158 = por %p156, %p157
      %p160 = scmp.ne.s32.totalorder %s143, %s159
      %p161 = scmp.eq.s32.totalorder %s20, 0
      %p162 = por %p160, %p161
      %p163 = scmp.le.s32.totalorder 1, %s14
      %p164 = scmp.lt.s32.totalorder %s14, 3
      %p165 = pnand %p163, %p164
      %p166 = pneg %p165
      // Predicated region
      $region9: #{tpu_custom_call.1} parent=5 // pred_check
        _
      $region10: #{tpu_custom_call.1} parent=5 // pred_check_branch
        %168 = sbr.rel (%p165) target = $region12
      $region11: #{tpu_custom_call.1} parent=5 // pred_region
        %s169 = ssub.s32 %s14, 1
        // Predicated region
        $region13: #{tpu_custom_call.1} parent=11 // pred_check
          %p170 = pneg %p47
        $region14: #{tpu_custom_call.1} parent=11 // pred_check_branch
          %172 = sbr.rel (%p170) target = $region16
        $region15: #{tpu_custom_call.1} parent=11 // pred_region
          _
        $region16: #{tpu_custom_call.1} parent=11 // pred_fallthru
          _
      $region12: #{tpu_custom_call.1} parent=5 // pred_fallthru
        _
      %p173 = scmp.lt.s32.totalorder %s14, 2
      // Predicated region
      $region17: #{tpu_custom_call.1} parent=5 // pred_check
        %p174 = pneg %p173
      $region18: #{tpu_custom_call.1} parent=5 // pred_check_branch
        %176 = sbr.rel (%p174) target = $region20
      $region19: #{tpu_custom_call.1} parent=5 // pred_region
        // Predicated region
        $region21: #{tpu_custom_call.1} parent=19 // pred_check
          %p177 = pneg %p69
        $region22: #{tpu_custom_call.1} parent=19 // pred_check_branch
          %179 = sbr.rel (%p177) target = $region24
        $region23: #{tpu_custom_call.1} parent=19 // pred_region
          %s180 = sand.u32 %s59, 1
          %s181 = scalar_lea.sflag [#allocation5], %s180
          %s182 = sand.u32 %s59, 1
          %s183 = smul.addr %s182, 8
          %s184 = scalar_lea.vmem [#allocation4], %s183
          %s185 = smul.u32 2, %s22
          %s187 = ssub.s32 128, 128
          %188 = vsyncadd %s181, %s187
          %s189 = smul.addr %s21, 2
          %s190 = sadd.s32 %s185, %s189
          %s191 = smul.addr %s190, 64
          %s192 = scalar_lea.hbm %s1, %s191
          %s194 = sshll.u32 %s184, 4
          %s195 = int_to_ptr.vmem [resolvable:$true] %s194
          %197 = dma.hbm_to_vmem [thread:$0]  %s192, 128, %s195, %s181
        $region24: #{tpu_custom_call.1} parent=19 // pred_fallthru
          _
        // Predicated region
        $region25: #{tpu_custom_call.1} parent=19 // pred_check
          %p198 = pneg %p97
        $region26: #{tpu_custom_call.1} parent=19 // pred_check_branch
          %200 = sbr.rel (%p198) target = $region28
        $region27: #{tpu_custom_call.1} parent=19 // pred_region
          %s201 = smul.u32 2, %s22
          %p202 = scmp.lt.s32.totalorder %s21, 1
          %s203 = scalar_select %p202, %s21, 1
          %p204 = scmp.lt.s32.totalorder %s201, 1
          %s205 = scalar_select %p204, %s201, 1
          %s206 = smul.addr %s203, 2
          %s207 = sadd.s32 %s205, %s206
          %s208 = scalar_lea.vmem %s2, %s207
          %s209 = smul.u32 2, %s22
        $region28: #{tpu_custom_call.1} parent=19 // pred_fallthru
          _
      $region20: #{tpu_custom_call.1} parent=5 // pred_fallthru
        _
      %p210 = scmp.le.s32.totalorder 1, %s14
      %p211 = scmp.lt.s32.totalorder %s14, 3
      %p212 = pnand %p210, %p211
      %p213 = pneg %p212
      // Predicated region
      $region29: #{tpu_custom_call.1} parent=5 // pred_check
        _
      $region30: #{tpu_custom_call.1} parent=5 // pred_check_branch
        %215 = sbr.rel (%p212) target = $region32
      $region31: #{tpu_custom_call.1} parent=5 // pred_region
        %s216 = ssub.s32 %s14, 1
        %s217 = sand.u32 %s62, 1
        %s218 = scalar_lea.sflag [#allocation5], %s217
        %s219 = sand.u32 %s62, 1
        %s220 = smul.addr %s219, 8
        %s221 = scalar_lea.vmem [#allocation4], %s220
        // Predicated region
        $region33: #{tpu_custom_call.1} parent=31 // pred_check
          %p222 = pneg %p75
        $region34: #{tpu_custom_call.1} parent=31 // pred_check_branch
          %224 = sbr.rel (%p222) target = $region36
        $region35: #{tpu_custom_call.1} parent=31 // pred_region
          %225 = dma.done %s218, 128
        $region36: #{tpu_custom_call.1} parent=31 // pred_fallthru
          _
        %p226 = pneg %p47
        %p227 = pneg %p44
        %s228 = sand.u32 %s62, 1
        %s229 = scalar_lea.sflag [#allocation5], %s228
        %s230 = sand.u32 %s62, 1
        %s231 = smul.addr %s230, 8
        %s232 = scalar_lea.vmem [#allocation4], %s231
        %p233 = pneg %p75
        %p234 = pneg %p72
        %s235 = smul.u32 2, %s24
        %p236 = scmp.lt.s32.totalorder %s23, 1
        %s237 = scalar_select %p236, %s23, 1
        %p238 = scmp.lt.s32.totalorder %s235, 1
        %s239 = scalar_select %p238, %s235, 1
        %s240 = smul.addr %s237, 2
        %s241 = sadd.s32 %s239, %s240
        %s242 = scalar_lea.vmem %s2, %s241
        %p243 = pneg %p103
        %p244 = pneg %p100
        %p245 = pneg %p129
        %p246 = pneg %p126
        %p247 = scmp.lt.s32.totalorder %s23, 1
        %s248 = scalar_select %p247, %s23, 1
        %s249 = scalar_lea.vmem %s3, %s248
        %p250 = pneg %p155
        %p251 = pneg %p152
        %p252 = scmp.lt.s32.totalorder %s23, 1
        %s253 = scalar_select %p252, %s23, 1
        %s254 = scalar_lea.vmem %s4, %s253
        %s255 = smul.u32 2, %s24
        %s256 = smul.u32 2, %s24
        %p257 = scmp.lt.s32.totalorder %s23, 1
        %s258 = scalar_select %p257, %s23, 1
        %p259 = scmp.lt.s32.totalorder %s256, 1
        %s260 = scalar_select %p259, %s256, 1
        %s261 = smul.addr %s258, 2
        %s262 = sadd.s32 %s260, %s261
        %s263 = scalar_lea.vmem %s2, %s262
        %s264 = smul.u32 2, %s24
        %p265 = scmp.lt.s32.totalorder %s23, 1
        %s266 = scalar_select %p265, %s23, 1
        %s267 = scalar_lea.vmem %s3, %s266
        %p268 = scmp.lt.s32.totalorder %s23, 1
        %s269 = scalar_select %p268, %s23, 1
        %s270 = scalar_lea.vmem %s4, %s269
        %p271 = scmp.eq.s32.totalorder %s24, 0
        // Predicated region
        $region37: #{tpu_custom_call.1} parent=31 // pred_check
          %p272 = pneg %p271
        $region38: #{tpu_custom_call.1} parent=31 // pred_check_branch
          %274 = sbr.rel (%p272) target = $region40
        $region39: #{tpu_custom_call.1} parent=31 // pred_region
          %v275 = vlaneseq
          %vm276 = vcmp.ge.s32.totalorder %v275, 0
          %vm277 = vcmp.lt.s32.totalorder %v275, 256
          %vm278 = vmand %vm276, %vm277
          %279 = vst.msk [vmem:[#allocation2] sm:$0x3] %vm278, 0.0
          %280 = vst.msk [vmem:[#allocation3] sm:$0x3] %vm278, 0.0
        $region40: #{tpu_custom_call.1} parent=31 // pred_fallthru
          _
        %v281 = vld [vmem:[%s221] sm:$0xff]
        %v282 = vld [vmem:[%s263] sm:$0x3]
        %v284 = vcombine.high %v281, %v281
        %vm286 = vcmask 1043456
        %v287 = vsel %vm286, %v281, -inf
        %v288 = vrot.slane %v287, 4
        %v289 = vmax.f32 %v287, %v288
        %v290 = vrot.slane %v289, 2
        %v291 = vmax.f32 %v289, %v290
        %v292 = vrot.slane %v291, 1
        %v293 = vmax.f32 %v291, %v292
        %v294 = vsel %vm286, %v284, -inf
        %v295 = vrot.slane %v294, 4
        %v296 = vmax.f32 %v294, %v295
        %v297 = vrot.slane %v296, 2
        %v298 = vmax.f32 %v296, %v297
        %v299 = vrot.slane %v298, 1
        %v300 = vmax.f32 %v298, %v299
        %v303 = vcombine.low %v293, %v300
        %v305 = vsub.f32 %v281, %v303
        %v306 = vmul.f32 %v305, 1.442695
        %v307 = vpow.pop %v306
        %v309 = vcombine.high %v307, %v307
        %v311 = vsel %vm286, %v307, 0.0
        %v312 = vrot.slane %v311, 4
        %v313 = vadd.f32 %v311, %v312
        %v314 = vrot.slane %v313, 2
        %v315 = vadd.f32 %v313, %v314
        %v316 = vrot.slane %v315, 1
        %v317 = vadd.f32 %v315, %v316
        %v318 = vsel %vm286, %v309, 0.0
        %v319 = vrot.slane %v318, 4
        %v320 = vadd.f32 %v318, %v319
        %v321 = vrot.slane %v320, 2
        %v322 = vadd.f32 %v320, %v321
        %v323 = vrot.slane %v322, 1
        %v324 = vadd.f32 %v322, %v323
        %v325 = vlaneseq
        %v326 = vshrl.u32 %v325, 7
        %v327 = vlaneseq
        %v328 = vshrl.u32 %v327, 7
        %v329 = vsub.s32 0, %v328
        %v330 = vrot.slane %v282, %v329
        %v331 = vlaneseq
        %v332 = vshrl.u32 %v331, 7
        %v333 = vsub.s32 1, %v332
        %v334 = vrot.slane %v282, %v333
        %vm335 = vcmp.eq.s32.totalorder %v326, %v330
        %vm336 = vcmp.eq.s32.totalorder %v326, %v334
        %v338 = vcombine.high %v305, %v305
        %v340 = vsel %vm335, %v305, 0.0
        %v341 = vsel %vm336, %v338, 0.0
        %v342 = vsel %vm286, %v340, 0.0
        %v343 = vrot.slane %v342, 4
        %v344 = vadd.f32 %v342, %v343
        %v345 = vrot.slane %v344, 2
        %v346 = vadd.f32 %v344, %v345
        %v347 = vrot.slane %v346, 1
        %v348 = vadd.f32 %v346, %v347
        %v349 = vsel %vm286, %v341, 0.0
        %v350 = vrot.slane %v349, 4
        %v351 = vadd.f32 %v349, %v350
        %v352 = vrot.slane %v351, 2
        %v353 = vadd.f32 %v351, %v352
        %v354 = vrot.slane %v353, 1
        %v355 = vadd.f32 %v353, %v354
        %v356 = vsel %vm335, %v307, 0.0
        %v357 = vsel %vm336, %v309, 0.0
        %v358 = vsel %vm286, %v356, 0.0
        %v359 = vrot.slane %v358, 4
        %v360 = vadd.f32 %v358, %v359
        %v361 = vrot.slane %v360, 2
        %v362 = vadd.f32 %v360, %v361
        %v363 = vrot.slane %v362, 1
        %v364 = vadd.f32 %v362, %v363
        %v365 = vsel %vm286, %v357, 0.0
        %v366 = vrot.slane %v365, 4
        %v367 = vadd.f32 %v365, %v366
        %v368 = vrot.slane %v367, 2
        %v369 = vadd.f32 %v367, %v368
        %v370 = vrot.slane %v369, 1
        %v371 = vadd.f32 %v369, %v370
        %v372 = vld [vmem:[%s0] sm:$0xf]
        %374 = vset.pattern.permute.xlu0 0
        %375 = vperm.xlu0 %374, %v372
        %v376 = vpop.permute.xlu0 %375
        %v378 = vsel %vm335, %v376, 0.0
        %v379 = vsel %vm336, %v376, 0.0
        %v380 = vsel %vm286, %v378, 0.0
        %v381 = vrot.slane %v380, 4
        %v382 = vadd.f32 %v380, %v381
        %v383 = vrot.slane %v382, 2
        %v384 = vadd.f32 %v382, %v383
        %v385 = vrot.slane %v384, 1
        %v386 = vadd.f32 %v384, %v385
        %v387 = vsel %vm286, %v379, 0.0
        %v388 = vrot.slane %v387, 4
        %v389 = vadd.f32 %v387, %v388
        %v390 = vrot.slane %v389, 2
        %v391 = vadd.f32 %v389, %v390
        %v392 = vrot.slane %v391, 1
        %v393 = vadd.f32 %v391, %v392
        %v394 = vlog2.pop %v317
        %v395 = vmul.f32 %v394, 0.6931472
        %v396 = vlog2.pop %v324
        %v397 = vmul.f32 %v396, 0.6931472
        %v398 = vsub.f32 %v348, %v395
        %v399 = vsub.f32 %v355, %v397
        %v400 = vrcp.pop %v317
        %v401 = vmul.f32 %v364, %v400
        %v402 = vrcp.pop %v324
        %v403 = vmul.f32 %v371, %v402
        %v404 = vlaneseq
        %v405 = vand.u32 %v404, 127
        %v406 = vadd.s32 %v405, 128
        %s407 = smul.u32 %s24, 256
        %v408 = vstv %s407
        %v409 = vadd.s32 %v408, %v405
        %v410 = vadd.s32 %v408, %v406
        %vm411 = vcmp.lt.s32.totalorder %v409, 256
        %vm412 = vcmp.lt.s32.totalorder %v410, 256
        %vm413 = vcmp.ne.s32.totalorder %v282, 255
        %v414 = vsel %vm411, 1, 0
        %v415 = vsel %vm412, 1, 0
        %v416 = vcombine.low %v414, %v415
        %v418 = vunpack.c.l.s4 1966171168
        %v419 = vunpack.c.0.s8 %v418
        %v420 = vlaneseq
        %v421 = vshrl.u32 %v420, 7
        %v422 = vsub.s32 %v419, %v421
        %v423 = vrot.slane %v416, %v422
        %v425 = vunpack.c.l.s4 1966171168
        %v426 = vunpack.c.0.s8 %v425
        %v427 = vlaneseq
        %v428 = vshrl.u32 %v427, 7
        %v429 = vsub.s32 %v426, %v428
        %v430 = vrot.slane %v423, %v429
        %vm431 = vcmp.ne.s32.totalorder %v430, 0
        %vm432 = vmand %vm413, %vm431
        %v433 = vsub.f32 1.0, %v401
        %v434 = vsub.f32 1.0, %v403
        %v435 = vmax.f32 %v433, 0.0
        %v436 = vmax.f32 %v434, 0.0
        %v437 = vmul.f32 %v435, %v435
        %v438 = vmul.f32 %v436, %v436
        %v439 = vsub.f32 0.0, %v386
        %v440 = vsub.f32 0.0, %v393
        %v441 = vmul.f32 %v439, %v437
        %v442 = vmul.f32 %v440, %v438
        %v443 = vmul.f32 %v441, %v398
        %v444 = vmul.f32 %v442, %v399
        %v445 = vld [vmem:[#allocation2] sm:$0x3]
        %v448 = vcombine.low %v443, %v444
        %v450 = vunpack.c.l.s4 1966171168
        %v451 = vunpack.c.0.s8 %v450
        %v452 = vlaneseq
        %v453 = vshrl.u32 %v452, 7
        %v454 = vsub.s32 %v451, %v453
        %v455 = vrot.slane %v448, %v454
        %v457 = vunpack.c.l.s4 1966171168
        %v458 = vunpack.c.0.s8 %v457
        %v459 = vlaneseq
        %v460 = vshrl.u32 %v459, 7
        %v461 = vsub.s32 %v458, %v460
        %v462 = vrot.slane %v455, %v461
        %v464 = vsel %vm432, %v462, 0.0
        %v465 = vadd.f32 %v445, %v464
        %v466 = vlaneseq
        %vm467 = vcmp.ge.s32.totalorder %v466, 0
        %vm468 = vcmp.lt.s32.totalorder %v466, 256
        %vm469 = vmand %vm467, %vm468
        %470 = vst.msk [vmem:[#allocation2] sm:$0x3] %vm469, %v465
        %v471 = vld [vmem:[#allocation3] sm:$0x3]
        %v472 = vsel %vm432, 1.0, 0.0
        %v473 = vadd.f32 %v471, %v472
        %474 = vst.msk [vmem:[#allocation3] sm:$0x3] %vm469, %v473
        // Predicated region
        $region41: #{tpu_custom_call.1} parent=31 // pred_check
          %p475 = pneg %p271
        $region42: #{tpu_custom_call.1} parent=31 // pred_check_branch
          %477 = sbr.rel (%p475) target = $region44
        $region43: #{tpu_custom_call.1} parent=31 // pred_region
          %v478 = vld [vmem:[#allocation2] sm:$0x3]
          %v480 = vlaneseq
          %v481 = vshrl.u32 %v480, 7
          %v482 = vsub.s32 0, %v481
          %v483 = vrot.slane %v478, %v482
          %v484 = vlaneseq
          %v485 = vshrl.u32 %v484, 7
          %v486 = vsub.s32 1, %v485
          %v487 = vrot.slane %v478, %v486
          %vm490 = vcmask 1040384
          %v491 = vsel %vm490, %v483, 0.0
          %v492 = vsel %vm490, %v487, 0.0
          %v493 = vadd.f32 %v491, %v492
          %494 = vadd.xlane.f32.xlu0 %v493
          %v495 = vpop.xlane.xlu0 %494
          %vm496 = vcmask 0
          %497 = vst.msk [vmem:[%s267] sm:$0x1] %vm496, %v495
          %v498 = vld [vmem:[#allocation3] sm:$0x3]
          %v500 = vlaneseq
          %v501 = vshrl.u32 %v500, 7
          %v502 = vsub.s32 0, %v501
          %v503 = vrot.slane %v498, %v502
          %v504 = vlaneseq
          %v505 = vshrl.u32 %v504, 7
          %v506 = vsub.s32 1, %v505
          %v507 = vrot.slane %v498, %v506
          %v510 = vsel %vm490, %v503, 0.0
          %v511 = vsel %vm490, %v507, 0.0
          %v512 = vadd.f32 %v510, %v511
          %513 = vadd.xlane.f32.xlu0 %v512
          %v514 = vpop.xlane.xlu0 %513
          %515 = vst.msk [vmem:[%s270] sm:$0x1] %vm496, %v514
        $region44: #{tpu_custom_call.1} parent=31 // pred_fallthru
          _
        %p516 = scmp.lt.s32.totalorder %s23, 1
        %s517 = scalar_select %p516, %s23, 1
        %s518 = scalar_lea.vmem %s3, %s517
        %p519 = scmp.lt.s32.totalorder %s23, 1
        %s520 = scalar_select %p519, %s23, 1
        %s521 = scalar_lea.vmem %s4, %s520
        // Predicated region
        $region45: #{tpu_custom_call.1} parent=31 // pred_check
          %p522 = pneg %p126
        $region46: #{tpu_custom_call.1} parent=31 // pred_check_branch
          %524 = sbr.rel (%p522) target = $region48
        $region47: #{tpu_custom_call.1} parent=31 // pred_region
          _
        $region48: #{tpu_custom_call.1} parent=31 // pred_fallthru
          _
        // Predicated region
        $region49: #{tpu_custom_call.1} parent=31 // pred_check
          %p525 = pneg %p152
        $region50: #{tpu_custom_call.1} parent=31 // pred_check_branch
          %527 = sbr.rel (%p525) target = $region52
        $region51: #{tpu_custom_call.1} parent=31 // pred_region
          _
        $region52: #{tpu_custom_call.1} parent=31 // pred_fallthru
          _
      $region32: #{tpu_custom_call.1} parent=5 // pred_fallthru
        _
      %p528 = scmp.le.s32.totalorder 2, %s14
      // Predicated region
      $region53: #{tpu_custom_call.1} parent=5 // pred_check
        %p529 = pneg %p528
      $region54: #{tpu_custom_call.1} parent=5 // pred_check_branch
        %531 = sbr.rel (%p529) target = $region56
      $region55: #{tpu_custom_call.1} parent=5 // pred_region
        %s532 = ssub.s32 %s14, 2
        // Predicated region
        $region57: #{tpu_custom_call.1} parent=55 // pred_check
          %p533 = pneg %p132
        $region58: #{tpu_custom_call.1} parent=55 // pred_check_branch
          %535 = sbr.rel (%p533) target = $region60
        $region59: #{tpu_custom_call.1} parent=55 // pred_region
          %p536 = scmp.lt.s32.totalorder %s25, 1
          %s537 = scalar_select %p536, %s25, 1
          %s538 = scalar_lea.vmem %s3, %s537
        $region60: #{tpu_custom_call.1} parent=55 // pred_fallthru
          _
        // Predicated region
        $region61: #{tpu_custom_call.1} parent=55 // pred_check
          %p539 = pneg %p158
        $region62: #{tpu_custom_call.1} parent=55 // pred_check_branch
          %541 = sbr.rel (%p539) target = $region64
        $region63: #{tpu_custom_call.1} parent=55 // pred_region
          %p542 = scmp.lt.s32.totalorder %s25, 1
          %s543 = scalar_select %p542, %s25, 1
          %s544 = scalar_lea.vmem %s4, %s543
        $region64: #{tpu_custom_call.1} parent=55 // pred_fallthru
          _
      $region56: #{tpu_custom_call.1} parent=5 // pred_fallthru
        _
    $region6: #{tpu_custom_call.1} parent=1 // loop_footer
      %s18 = sadd.s32 1, %s14
    $region7: #{tpu_custom_call.1} parent=1 // loop_footer_branch
      %13 = sbr.rel target = $region3
    $region8: #{tpu_custom_call.1} parent=1 // loop_exit
      _
    %545 = vsyncpa [#allocation5], 1
    %s546 = scalar_lea.sflag [#allocation5], 1
    %547 = vsyncpa %s546, 1

</llo_original>
